<compile_context>
chip_gen: v7x
topology: tpu7x:2x2x1
jax: 0.10.0
libtpu: 0.0.40
codegen_flags: <defaults>
</compile_context>

<pallas_src>
import functools
from math import log

import jax
import jax.numpy as jnp
from jax.experimental import pallas as pl
from jax.experimental.pallas import tpu as pltpu


def _lsa_kernel(x_ref, wqkv_ref, wout_ref, o_ref, *, heads, seq_len, block_batch):
    """One grid step == `block_batch` batches, rows = block_batch * seq_len.

    x_ref    : (rows, D)       f32
    wqkv_ref : (D, 3*inner)    bf16, exp(temperature) pre-folded into q columns
    wout_ref : (inner, D)      bf16
    o_ref    : (rows, D)       f32
    """
    n = seq_len
    bb = block_batch
    inner = wout_ref.shape[0]
    d = inner // heads
    bh = bb * heads
    rows = bb * n
    mm_dtype = wqkv_ref.dtype            # bf16 MXU inputs, f32 accumulation

    # ---- QKV projection: one MXU matmul over every row of the block. ----
    x = x_ref[...].astype(mm_dtype)                                    # (rows, D)
    qkv = jnp.dot(x, wqkv_ref[...],
                  preferred_element_type=jnp.float32)                  # (rows, 3*inner) f32
    qkv = qkv.astype(mm_dtype)           # single cast; softmax math stays f32 below

    # ---- Head-batched relayout: 'b n (h d) -> (b h) n d'. ----
    def split_heads(t):
        return (t.reshape(bb, n, heads, d)
                 .transpose(0, 2, 1, 3)
                 .reshape(bh, n, d))

    q = split_heads(qkv[:, :inner])                # temperature already folded in
    k = split_heads(qkv[:, inner:2 * inner])
    v = split_heads(qkv[:, 2 * inner:])

    # ---- Scores for all (batch, head) pairs in one batched MXU call. ----
    dots = jnp.einsum('bqd,bkd->bqk', q, k,
                      preferred_element_type=jnp.float32)              # (bh, n, n) f32

    # Diagonal (self-token) mask, shared across every batch / head.
    row = jax.lax.broadcasted_iota(jnp.int32, (n, n), 0)
    col = jax.lax.broadcasted_iota(jnp.int32, (n, n), 1)
    mask_value = -jnp.finfo(jnp.float32).max
    dots = jnp.where((row == col)[None, :, :], mask_value, dots)

    # Softmax along keys, strictly in f32.  Masked entries may underflow to
    # -inf after the max subtraction; exp(-inf) == 0 is exactly what we want.
    dots = dots - jnp.max(dots, axis=-1, keepdims=True)
    e = jnp.exp(dots)
    attn = e * pl.reciprocal(jnp.sum(e, axis=-1, keepdims=True), approx=True)

    # ---- attn @ v, batched over all (batch, head) pairs. ----
    o = jnp.einsum('bqk,bkd->bqd', attn.astype(mm_dtype), v,
                   preferred_element_type=jnp.float32)                 # (bh, n, d) f32

    # ---- Fused output projection: one (rows, inner) @ (inner, D) matmul. ----
    o = (o.reshape(bb, heads, n, d)
          .transpose(0, 2, 1, 3)                    # '(b h) n d -> b n (h d)'
          .reshape(rows, inner)
          .astype(mm_dtype))
    o_ref[...] = jnp.dot(o, wout_ref[...],
                         preferred_element_type=jnp.float32).astype(o_ref.dtype)


def _vmem_bytes_estimate(rows, dim, inner, heads, seq_len, bb):
    """Rough per-grid-step VMEM working set (bytes)."""
    d = inner // heads
    bh = bb * heads
    io = 2 * 2 * rows * dim * 4                        # x + out blocks, double-buffered f32
    wts = 2 * 2 * (dim * 3 * inner + inner * dim)      # bf16 weights, double-buffered
    work = (rows * 3 * inner * (4 + 2)                 # qkv f32 + bf16 copy
            + 3 * bh * seq_len * d * 2                 # head-batched q/k/v bf16
            + 2 * bh * seq_len * seq_len * 4           # scores + exp, f32
            + bh * seq_len * d * 4                     # attn@v f32
            + rows * inner * 2)                        # re-merged heads bf16
    return io + wts + work


def _pick_block_batch(batch, seq_len, dim, inner, heads, *,
                      max_rows=1024, vmem_budget=40 * 1024 * 1024):
    """Largest divisor bb of `batch` whose (bb*seq_len, dim) row tile is
    8-aligned, fits the VMEM budget, and leaves >= 2 grid steps (v7x megacore)."""
    best = None
    for bb in range(1, batch + 1):
        if batch % bb:
            continue
        rows = bb * seq_len
        if rows % 8 != 0 and bb != batch:
            continue                                   # (8,128) tiling constraint
        if rows > max_rows:
            continue
        if batch >= 2 and batch // bb < 2:
            continue                                   # keep the parallel axis shardable
        if _vmem_bytes_estimate(rows, dim, inner, heads, seq_len, bb) > vmem_budget:
            continue
        best = bb
    if best is None:
        best = batch                                   # full-array block is always legal
    return best


def lsa_forward(x, w_qkv, w_out, temperature, *, heads,
                block_batch=None, matmul_dtype=jnp.bfloat16):
    """x: (B, N, D) f32; w_qkv: (D, 3*inner); w_out: (inner, D); temperature scalar."""
    B, N, D = x.shape
    inner = w_out.shape[0]
    assert w_qkv.shape == (D, 3 * inner)
    assert inner % heads == 0

    if block_batch is None:
        block_batch = _pick_block_batch(B, N, D, inner, heads)
    assert B % block_batch == 0
    grid_b = B // block_batch
    rows_per_block = block_batch * N

    # Fold exp(temperature) into the q columns of W_qkv in f32, before the bf16
    # cast (equivalent precision to scaling q in f32; exact at the init value).
    scale = jnp.exp(temperature).astype(jnp.float32)
    wqkv_scaled = w_qkv.astype(jnp.float32).at[:, :inner].multiply(scale)
    wqkv_c = wqkv_scaled.astype(matmul_dtype)          # bf16 weights: half the DMA
    wout_c = w_out.astype(matmul_dtype)

    x2 = x.reshape(B * N, D)                           # fold batch into the matmul M dim

    vmem_limit = int(min(
        64 * 1024 * 1024,                              # v7x physical ceiling per TC
        max(32 * 1024 * 1024,                          # lift v5e's 16 MiB default
            2 * _vmem_bytes_estimate(rows_per_block, D, inner, heads, N, block_batch))))

    kernel = functools.partial(_lsa_kernel, heads=heads, seq_len=N,
                               block_batch=block_batch)
    out = pl.pallas_call(
        kernel,
        out_shape=jax.ShapeDtypeStruct((B * N, D), x.dtype),
        grid=(grid_b,),
        in_specs=[
            pl.BlockSpec((rows_per_block, D), lambda i: (i, 0)),   # x rows
            pl.BlockSpec((D, 3 * inner), lambda i: (0, 0)),        # w_qkv (grid-invariant)
            pl.BlockSpec((inner, D), lambda i: (0, 0)),            # w_out (grid-invariant)
        ],
        out_specs=pl.BlockSpec((rows_per_block, D), lambda i: (i, 0)),
        compiler_params=pltpu.CompilerParams(
            dimension_semantics=("parallel",),
            vmem_limit_bytes=vmem_limit),
    )(x2, wqkv_c, wout_c)
    return out.reshape(B, N, D)


def lsa_reference(x, w_qkv, w_out, temperature, *, heads):
    """Plain-JAX reference matching the PyTorch forward (dropout = 0)."""
    B, N, D = x.shape
    inner = w_out.shape[0]
    d = inner // heads
    qkv = x @ w_qkv                                    # (B, N, 3*inner)
    q, k, v = jnp.split(qkv, 3, axis=-1)

    def split_heads(t):                                # b n (h d) -> b h n d
        return t.reshape(B, N, heads, d).transpose(0, 2, 1, 3)

    q, k, v = map(split_heads, (q, k, v))
    dots = jnp.einsum('bhnd,bhmd->bhnm', q, k) * jnp.exp(temperature)
    mask = jnp.eye(N, dtype=bool)
    dots = jnp.where(mask, -jnp.finfo(dots.dtype).max, dots)
    attn = jax.nn.softmax(dots, axis=-1)
    out = jnp.einsum('bhnm,bhmd->bhnd', attn, v)
    out = out.transpose(0, 2, 1, 3).reshape(B, N, inner)  # b h n d -> b n (h d)
    return out @ w_out


if __name__ == "__main__":
    # Small shapes consistent with the module.
    B, N, DIM = 2, 8, 32
    HEADS, DIM_HEAD = 4, 16
    INNER = HEADS * DIM_HEAD

    key = jax.random.PRNGKey(0)
    kx, kq, ko = jax.random.split(key, 3)
    x = jax.random.normal(kx, (B, N, DIM), dtype=jnp.float32)
    # deterministic synthetic parameters (shapes from __init__; no checkpoint load)
    w_qkv = jax.random.normal(kq, (DIM, 3 * INNER), dtype=jnp.float32) * 0.05
    w_out = jax.random.normal(ko, (INNER, DIM), dtype=jnp.float32) * 0.05
    temperature = jnp.float32(log(DIM_HEAD ** (-0.5)))  # nn.Parameter init value

    out = lsa_forward(x, w_qkv, w_out, temperature, heads=HEADS)
    out = jax.block_until_ready(out)

    ref = lsa_reference(x, w_qkv, w_out, temperature, heads=HEADS)
    assert out.shape == (B, N, DIM)
    # bf16 MXU inputs (f32 accumulation / f32 softmax) -> slightly looser
    # tolerance than the pure-f32 reference.
    assert jnp.allclose(out, ref, atol=2e-2, rtol=2e-2), "mismatch vs reference"

    print("KERNEL_OK")
</pallas_src>

<mosaic_0001>
module attributes {stable_mosaic.version = 11 : i64} {
  func.func @_lsa_kernel(%arg0: i32, %arg1: memref<8x32xf32, #tpu.memory_space<vmem>>, %arg2: memref<32x192xbf16, #tpu.memory_space<vmem>>, %arg3: memref<64x32xbf16, #tpu.memory_space<vmem>>, %arg4: memref<8x32xf32, #tpu.memory_space<vmem>>) attributes {dimension_semantics = [#tpu.dimension_semantics<parallel>], iteration_bounds = array<i64: 2>, scalar_prefetch = 0 : i64, scratch_operands = 0 : i64, tpu.core_type = #tpu.core_type<tc>, window_params = [{transform_indices = @transform_0, window_bounds = array<i64: 8, 32>}, {pipeline_mode = #tpu.pipeline_mode<synchronous>, transform_indices = @transform_1, window_bounds = array<i64: 32, 192>}, {pipeline_mode = #tpu.pipeline_mode<synchronous>, transform_indices = @transform_2, window_bounds = array<i64: 64, 32>}, {transform_indices = @transform_3, window_bounds = array<i64: 8, 32>}]} {
    %c0 = arith.constant 0 : index
    %c0_0 = arith.constant 0 : index
    %0 = vector.load %arg1[%c0, %c0_0] : memref<8x32xf32, #tpu.memory_space<vmem>>, vector<8x32xf32>
    %1 = arith.truncf %0 : vector<8x32xf32> to vector<8x32xbf16>
    %c0_1 = arith.constant 0 : index
    %c0_2 = arith.constant 0 : index
    %2 = vector.load %arg2[%c0_1, %c0_2] : memref<32x192xbf16, #tpu.memory_space<vmem>>, vector<32x192xbf16>
    %cst = arith.constant dense<0.000000e+00> : vector<8x192xf32>
    %3 = tpu.matmul %1, %2, %cst {dimension_numbers = #tpu.dot_dimension_numbers<[1], [0], [0], [1], [0, 0, 1, 1], [], []>} : vector<8x32xbf16>, vector<32x192xbf16>, vector<8x192xf32> -> vector<8x192xf32>
    %4 = arith.truncf %3 : vector<8x192xf32> to vector<8x192xbf16>
    %5 = vector.extract_strided_slice %4 {offsets = [0, 0], sizes = [8, 64], strides = [1, 1]} : vector<8x192xbf16> to vector<8x64xbf16>
    %6 = vector.shape_cast %5 : vector<8x64xbf16> to vector<1x8x4x16xbf16>
    %7 = tpu.transpose %6, [0, 2, 1, 3] : vector<1x8x4x16xbf16> -> vector<1x4x8x16xbf16>
    %8 = vector.shape_cast %7 : vector<1x4x8x16xbf16> to vector<4x8x16xbf16>
    %9 = vector.extract_strided_slice %4 {offsets = [0, 64], sizes = [8, 64], strides = [1, 1]} : vector<8x192xbf16> to vector<8x64xbf16>
    %10 = vector.shape_cast %9 : vector<8x64xbf16> to vector<1x8x4x16xbf16>
    %11 = tpu.transpose %10, [0, 2, 1, 3] : vector<1x8x4x16xbf16> -> vector<1x4x8x16xbf16>
    %12 = vector.shape_cast %11 : vector<1x4x8x16xbf16> to vector<4x8x16xbf16>
    %13 = vector.extract_strided_slice %4 {offsets = [0, 128], sizes = [8, 64], strides = [1, 1]} : vector<8x192xbf16> to vector<8x64xbf16>
    %14 = vector.shape_cast %13 : vector<8x64xbf16> to vector<1x8x4x16xbf16>
    %15 = tpu.transpose %14, [0, 2, 1, 3] : vector<1x8x4x16xbf16> -> vector<1x4x8x16xbf16>
    %16 = vector.shape_cast %15 : vector<1x4x8x16xbf16> to vector<4x8x16xbf16>
    "tpu.trace_start"() <{level = 10 : i32, message = "bqd,bkd->bqk"}> : () -> ()
    %cst_3 = arith.constant dense<0.000000e+00> : vector<4x8x8xf32>
    %17 = tpu.matmul %8, %12, %cst_3 {dimension_numbers = #tpu.dot_dimension_numbers<[2], [2], [1], [1], [0, 0, 0, 1, 1, 1], [0], [0]>} : vector<4x8x16xbf16>, vector<4x8x16xbf16>, vector<4x8x8xf32> -> vector<4x8x8xf32>
    "tpu.trace_stop"() : () -> ()
    %18 = tpu.iota {dimensions = array<i32: 0>} : vector<8x8xi32>
    %19 = tpu.iota {dimensions = array<i32: 1>} : vector<8x8xi32>
    %20 = arith.cmpi eq, %18, %19 : vector<8x8xi32>
    %21 = vector.shape_cast %20 : vector<8x8xi1> to vector<1x8x8xi1>
    %cst_4 = arith.constant -3.40282347E+38 : f32
    %22 = vector.shape_cast %21 : vector<1x8x8xi1> to vector<1x8x8xi1>
    %23 = vector.broadcast %22 : vector<1x8x8xi1> to vector<4x8x8xi1>
    %24 = vector.broadcast %cst_4 : f32 to vector<4x8x8xf32>
    %25 = arith.select %23, %24, %17 : vector<4x8x8xi1>, vector<4x8x8xf32>
    %cst_5 = arith.constant dense<0xFF800000> : vector<4x8xf32>
    %26 = vector.multi_reduction <maximumf>, %25, %cst_5 [2] : vector<4x8x8xf32> to vector<4x8xf32>
    %27 = vector.shape_cast %26 : vector<4x8xf32> to vector<4x8x1xf32>
    %28 = vector.broadcast %27 : vector<4x8x1xf32> to vector<4x8x8xf32>
    %29 = arith.subf %25, %28 : vector<4x8x8xf32>
    %30 = math.exp %29 : vector<4x8x8xf32>
    %cst_6 = arith.constant dense<0.000000e+00> : vector<4x8xf32>
    %31 = vector.multi_reduction <add>, %30, %cst_6 [2] : vector<4x8x8xf32> to vector<4x8xf32>
    %32 = vector.shape_cast %31 : vector<4x8xf32> to vector<4x8x1xf32>
    %33 = tpu.reciprocal %32 {approx = true} : vector<4x8x1xf32> -> vector<4x8x1xf32>
    %34 = vector.broadcast %33 : vector<4x8x1xf32> to vector<4x8x8xf32>
    %35 = arith.mulf %30, %34 : vector<4x8x8xf32>
    %36 = arith.truncf %35 : vector<4x8x8xf32> to vector<4x8x8xbf16>
    "tpu.trace_start"() <{level = 10 : i32, message = "bqk,bkd->bqd"}> : () -> ()
    %cst_7 = arith.constant dense<0.000000e+00> : vector<4x8x16xf32>
    %37 = tpu.matmul %36, %16, %cst_7 {dimension_numbers = #tpu.dot_dimension_numbers<[2], [1], [1], [2], [0, 0, 0, 1, 1, 2], [0], [0]>} : vector<4x8x8xbf16>, vector<4x8x16xbf16>, vector<4x8x16xf32> -> vector<4x8x16xf32>
    "tpu.trace_stop"() : () -> ()
    %38 = vector.shape_cast %37 : vector<4x8x16xf32> to vector<1x4x8x16xf32>
    %39 = tpu.transpose %38, [0, 2, 1, 3] : vector<1x4x8x16xf32> -> vector<1x8x4x16xf32>
    %40 = vector.shape_cast %39 : vector<1x8x4x16xf32> to vector<8x64xf32>
    %41 = arith.truncf %40 : vector<8x64xf32> to vector<8x64xbf16>
    %c0_8 = arith.constant 0 : index
    %c0_9 = arith.constant 0 : index
    %42 = vector.load %arg3[%c0_8, %c0_9] : memref<64x32xbf16, #tpu.memory_space<vmem>>, vector<64x32xbf16>
    %cst_10 = arith.constant dense<0.000000e+00> : vector<8x32xf32>
    %43 = tpu.matmul %41, %42, %cst_10 {dimension_numbers = #tpu.dot_dimension_numbers<[1], [0], [0], [1], [0, 0, 1, 1], [], []>} : vector<8x64xbf16>, vector<64x32xbf16>, vector<8x32xf32> -> vector<8x32xf32>
    %c0_11 = arith.constant 0 : index
    %c0_12 = arith.constant 0 : index
    %44 = vector.load %arg4[%c0_11, %c0_12] : memref<8x32xf32, #tpu.memory_space<vmem>>, vector<8x32xf32>
    tpu.vector_store %arg4[%c0_11, %c0_12], %43 {strides = array<i32>} : memref<8x32xf32, #tpu.memory_space<vmem>>, vector<8x32xf32>,
    return
  }
  func.func @transform_0(%arg0: i32) -> (i32, i32) {
    %c0_i32 = arith.constant 0 : i32
    %c0_i32_0 = arith.constant 0 : i32
    return %arg0, %c0_i32 : i32, i32
  }
  func.func @transform_1(%arg0: i32) -> (i32, i32) {
    %c0_i32 = arith.constant 0 : i32
    %c0_i32_0 = arith.constant 0 : i32
    %c0_i32_1 = arith.constant 0 : i32
    return %c0_i32, %c0_i32_0 : i32, i32
  }
  func.func @transform_2(%arg0: i32) -> (i32, i32) {
    %c0_i32 = arith.constant 0 : i32
    %c0_i32_0 = arith.constant 0 : i32
    %c0_i32_1 = arith.constant 0 : i32
    return %c0_i32, %c0_i32_0 : i32, i32
  }
  func.func @transform_3(%arg0: i32) -> (i32, i32) {
    %c0_i32 = arith.constant 0 : i32
    %c0_i32_0 = arith.constant 0 : i32
    return %arg0, %c0_i32 : i32, i32
  }
}

</mosaic_0001>

<llo_original>
// kernel: tpu_custom_call.1
$region0: #{tpu_custom_call.1}
  #allocation0 [shape = 'u32[]', space=smem, size = 0x4, offset = 0x4, fixed_abs, tag = 'smem constant byte address 0x4 - core index']
  #allocation1 [shape = 'u32[144,128]{1,0:T(1,128)}', space=vmem, size = 0x12000, scoped, tag = 'internal scratch']
  %s0 = inlined_call_operand.vmem [shape: f32[16,32], index: 0, kind: input, shape index: {}]
  %s1 = inlined_call_operand.vmem [shape: bf16[32,192], index: 1, kind: input, shape index: {}]
  %s2 = inlined_call_operand.vmem [shape: bf16[64,32], index: 2, kind: input, shape index: {}]
  %s3 = inlined_call_operand.hbm [shape: f32[16,32], index: 3, kind: output, shape index: {}]
  %s4 = sld [smem:[#allocation0]]
  $region45: #{tpu_custom_call.1} parent=0
    _
  %s6 = ssub.s32 1, %s4
  %s7 = scalar_select 0, %s6, %s4
  $region1: #{tpu_custom_call.1} parent=0
    #allocation2 [shape = 'u8[8192]{0}', space=vmem, size = 0x2000, scoped, tag = 'output window, operand 0']
    #allocation3 [shape = 's32[2]{0}', space=sflag, size = 0x8, scoped, tag = 'scoped memory for tpu_custom_call.1']
    %8 = vsyncpa [#allocation3], 0
    %s9 = scalar_lea.sflag [#allocation3], 1
    %10 = vsyncpa %s9, 0
    loop: start=0, step=1, limit=4
    $region2: #{tpu_custom_call.1} parent=1 // loop_pre_header
      _
    $region3: #{tpu_custom_call.1} parent=1 // loop_header
      %s12 = sphi 0, %s16
      %p13 = scmp.ge.s32.totalorder %s12, 4
      %s22 = sphi 0, %s24
      %s25 = sphi 0, %s22
      %s26 = sphi 0, %s25
      %s42 = sphi 0, %s26
      %s46 = sphi 0, %s46
      %s48 = sphi 0, %s46
      %s49 = sphi 0, %s48
      %s63 = sphi 0, %s49
      %s67 = sphi 0, %s67
      %s69 = sphi 0, %s67
      %s70 = sphi 0, %s69
      %s84 = sphi 0, %s70
      %s90 = sphi 0, %s92
      %s93 = sphi 0, %s90
      %s94 = sphi 0, %s93
      %s110 = sphi 0, %s94
    $region4: #{tpu_custom_call.1} parent=1 // loop_header_branch
      %15 = sbr.rel (%p13) target = $region8
    $region5: #{tpu_custom_call.1} parent=1 // loop_body
      %s17 = ssub.s32 %s12, 1
      %s18 = ssub.s32 %s12, 2
      %s19 = sadd.s32 %s12, 1
      %s20 = ssub.s32 %s12, %s19
      %p21 = scmp.eq.s32.totalorder %s20, 0
      %s23 = sadd.s32 %s22, 1
      %s24 = scalar_select %p21, %s22, %s23
      %p27 = pneg %p21
      %p28 = scmp.eq.s32.totalorder %s12, 1
      %p29 = por %p27, %p28
      %p30 = scmp.ne.s32.totalorder %s22, %s25
      %p31 = scmp.eq.s32.totalorder %s12, 0
      %p32 = por %p30, %p31
      %p33 = scmp.ne.s32.totalorder %s22, %s25
      %p34 = scmp.eq.s32.totalorder %s17, 1
      %p35 = por %p33, %p34
      %p36 = scmp.ne.s32.totalorder %s25, %s26
      %p37 = scmp.eq.s32.totalorder %s17, 0
      %p38 = por %p36, %p37
      %p39 = scmp.ne.s32.totalorder %s25, %s26
      %p40 = scmp.eq.s32.totalorder %s18, 1
      %p41 = por %p39, %p40
      %p43 = scmp.ne.s32.totalorder %s26, %s42
      %p44 = scmp.eq.s32.totalorder %s18, 0
      %p45 = por %p43, %p44
      %s47 = sadd.s32 %s46, 1
      %p50 = scmp.eq.s32.totalorder %s12, 1
      %p51 = scmp.ne.s32.totalorder %s46, %s48
      %p52 = scmp.eq.s32.totalorder %s12, 0
      %p53 = por %p51, %p52
      %p54 = scmp.ne.s32.totalorder %s46, %s48
      %p55 = scmp.eq.s32.totalorder %s17, 1
      %p56 = por %p54, %p55
      %p57 = scmp.ne.s32.totalorder %s48, %s49
      %p58 = scmp.eq.s32.totalorder %s17, 0
      %p59 = por %p57, %p58
      %p60 = scmp.ne.s32.totalorder %s48, %s49
      %p61 = scmp.eq.s32.totalorder %s18, 1
      %p62 = por %p60, %p61
      %p64 = scmp.ne.s32.totalorder %s49, %s63
      %p65 = scmp.eq.s32.totalorder %s18, 0
      %p66 = por %p64, %p65
      %s68 = sadd.s32 %s67, 1
      %p71 = scmp.eq.s32.totalorder %s12, 1
      %p72 = scmp.ne.s32.totalorder %s67, %s69
      %p73 = scmp.eq.s32.totalorder %s12, 0
      %p74 = por %p72, %p73
      %p75 = scmp.ne.s32.totalorder %s67, %s69
      %p76 = scmp.eq.s32.totalorder %s17, 1
      %p77 = por %p75, %p76
      %p78 = scmp.ne.s32.totalorder %s69, %s70
      %p79 = scmp.eq.s32.totalorder %s17, 0
      %p80 = por %p78, %p79
      %p81 = scmp.ne.s32.totalorder %s69, %s70
      %p82 = scmp.eq.s32.totalorder %s18, 1
      %p83 = por %p81, %p82
      %p85 = scmp.ne.s32.totalorder %s70, %s84
      %p86 = scmp.eq.s32.totalorder %s18, 0
      %p87 = por %p85, %p86
      %s88 = ssub.s32 %s12, %s19
      %p89 = scmp.eq.s32.totalorder %s88, 0
      %s91 = sadd.s32 %s90, 1
      %s92 = scalar_select %p89, %s90, %s91
      %p95 = pneg %p89
      %p96 = scmp.eq.s32.totalorder %s12, 1
      %p97 = por %p95, %p96
      %p98 = scmp.ne.s32.totalorder %s90, %s93
      %p99 = scmp.eq.s32.totalorder %s12, 0
      %p100 = por %p98, %p99
      %p101 = scmp.ne.s32.totalorder %s90, %s93
      %p102 = scmp.eq.s32.totalorder %s17, 1
      %p103 = por %p101, %p102
      %p104 = scmp.ne.s32.totalorder %s93, %s94
      %p105 = scmp.eq.s32.totalorder %s17, 0
      %p106 = por %p104, %p105
      %p107 = scmp.ne.s32.totalorder %s93, %s94
      %p108 = scmp.eq.s32.totalorder %s18, 1
      %p109 = por %p107, %p108
      %p111 = scmp.ne.s32.totalorder %s94, %s110
      %p112 = scmp.eq.s32.totalorder %s18, 0
      %p113 = por %p111, %p112
      %p114 = scmp.le.s32.totalorder 1, %s12
      %p115 = scmp.lt.s32.totalorder %s12, 3
      %p116 = pnand %p114, %p115
      %p117 = pneg %p116
      // Predicated region
      $region9: #{tpu_custom_call.1} parent=5 // pred_check
        _
      $region10: #{tpu_custom_call.1} parent=5 // pred_check_branch
        %119 = sbr.rel (%p116) target = $region12
      $region11: #{tpu_custom_call.1} parent=5 // pred_region
        %s120 = ssub.s32 %s12, 1
        // Predicated region
        $region13: #{tpu_custom_call.1} parent=11 // pred_check
          %p121 = pneg %p59
        $region14: #{tpu_custom_call.1} parent=11 // pred_check_branch
          %123 = sbr.rel (%p121) target = $region16
        $region15: #{tpu_custom_call.1} parent=11 // pred_region
          _
        $region16: #{tpu_custom_call.1} parent=11 // pred_fallthru
          _
        // Predicated region
        $region17: #{tpu_custom_call.1} parent=11 // pred_check
          %p124 = pneg %p80
        $region18: #{tpu_custom_call.1} parent=11 // pred_check_branch
          %126 = sbr.rel (%p124) target = $region20
        $region19: #{tpu_custom_call.1} parent=11 // pred_region
          _
        $region20: #{tpu_custom_call.1} parent=11 // pred_fallthru
          _
      $region12: #{tpu_custom_call.1} parent=5 // pred_fallthru
        _
      %p127 = scmp.lt.s32.totalorder %s12, 2
      // Predicated region
      $region21: #{tpu_custom_call.1} parent=5 // pred_check
        %p128 = pneg %p127
      $region22: #{tpu_custom_call.1} parent=5 // pred_check_branch
        %130 = sbr.rel (%p128) target = $region24
      $region23: #{tpu_custom_call.1} parent=5 // pred_region
        // Predicated region
        $region25: #{tpu_custom_call.1} parent=23 // pred_check
          %p131 = pneg %p32
        $region26: #{tpu_custom_call.1} parent=23 // pred_check_branch
          %133 = sbr.rel (%p131) target = $region28
        $region27: #{tpu_custom_call.1} parent=23 // pred_region
          %p134 = scmp.lt.s32.totalorder %s12, 1
          %s135 = scalar_select %p134, %s12, 1
          %s136 = smul.addr %s135, 8
          %s137 = scalar_lea.vmem %s0, %s136
        $region28: #{tpu_custom_call.1} parent=23 // pred_fallthru
          _
      $region24: #{tpu_custom_call.1} parent=5 // pred_fallthru
        _
      %p138 = scmp.le.s32.totalorder 1, %s12
      %p139 = scmp.lt.s32.totalorder %s12, 3
      %p140 = pnand %p138, %p139
      %p141 = pneg %p140
      // Predicated region
      $region29: #{tpu_custom_call.1} parent=5 // pred_check
        _
      $region30: #{tpu_custom_call.1} parent=5 // pred_check_branch
        %143 = sbr.rel (%p140) target = $region32
      $region31: #{tpu_custom_call.1} parent=5 // pred_region
        %s144 = ssub.s32 %s12, 1
        %p145 = scmp.lt.s32.totalorder %s17, 1
        %s146 = scalar_select %p145, %s17, 1
        %s147 = smul.addr %s146, 8
        %s148 = scalar_lea.vmem %s0, %s147
        %p149 = pneg %p38
        %p150 = pneg %p35
        %p151 = pneg %p59
        %p152 = pneg %p56
        %p153 = pneg %p80
        %p154 = pneg %p77
        %p155 = pneg %p106
        %p156 = pneg %p103
        %s157 = sand.u32 %s93, 1
        %s158 = scalar_lea.sflag [#allocation3], %s157
        %s159 = sand.u32 %s93, 1
        %s160 = smul.addr %s159, 8
        %s161 = scalar_lea.vmem [#allocation2], %s160
        %p162 = scmp.lt.s32.totalorder %s17, 1
        %s163 = scalar_select %p162, %s17, 1
        %s164 = smul.addr %s163, 8
        %s165 = scalar_lea.vmem %s0, %s164
        %v167 = vld [vmem:[%s165] sm:$0xff]
        %v168 = vpack.c.bf16 %v167, %v167
        %v169 = vld [vmem:[%s1] sm:$0xff]
        %v170 = vld [vmem:[%s1 + $0x8] sm:$0xff]
        %v171 = vld [vmem:[%s1 + $0x10] sm:$0xff]
        %v172 = vld [vmem:[%s1 + $0x18] sm:$0xff]
        %v177 = vunpack.c.l.b16 %v169
        %v178 = vunpack.c.h.b16 %v169
        %v179 = vunpack.c.l.b16 %v170
        %v180 = vunpack.c.h.b16 %v170
        %v181 = vunpack.c.l.b16 %v171
        %v182 = vunpack.c.h.b16 %v171
        %v183 = vunpack.c.l.b16 %v172
        %v184 = vunpack.c.h.b16 %v172
        %v185 = vpack.c.b16 %v179, %v177
        %v186 = vpack.c.b16 %v180, %v178
        %v187 = vpack.c.b16 %v183, %v181
        %v188 = vpack.c.b16 %v184, %v182
        %vm193 = vcmask 261120
        %v195 = vsel %vm193, %v168, 0
        %197 = vmatprep.subr.bf16.mxu0 %v186
        %198 = vmatpush1.bf16.msra.mxu0 %v185
        %199 = vmatprep.subr.bf16.mxu0 %v188
        %200 = vmatpush1.bf16.msra.mxu0 %v187
        %201 = vmatprep.subr.bf16.mxu0 0
        %202 = vmatpush1.bf16.msra.mxu0 0
        %203 = vmatprep.subr.bf16.mxu0 0
        %204 = vmatpush1.bf16.msra.mxu0 0
        %205 = vmatprep.subr.bf16.mxu0 0
        %206 = vmatpush1.bf16.msra.mxu0 0
        %207 = vmatprep.subr.bf16.mxu0 0
        %208 = vmatpush1.bf16.msra.mxu0 0
        %209 = vmatprep.subr.bf16.mxu0 0
        %210 = vmatpush1.bf16.msra.mxu0 0
        %211 = vmatprep.subr.bf16.mxu0 0
        %212 = vmatpush1.bf16.msra.mxu0 0
        %213 = vmatprep.subr.bf16.mxu0 0
        %214 = vmatpush1.bf16.msra.mxu0 0
        %215 = vmatprep.subr.bf16.mxu0 0
        %216 = vmatpush1.bf16.msra.mxu0 0
        %217 = vmatprep.subr.bf16.mxu0 0
        %218 = vmatpush1.bf16.msra.mxu0 0
        %219 = vmatprep.subr.bf16.mxu0 0
        %220 = vmatpush1.bf16.msra.mxu0 0
        %221 = vmatprep.subr.bf16.mxu0 0
        %222 = vmatpush1.bf16.msra.mxu0 0
        %223 = vmatprep.subr.bf16.mxu0 0
        %224 = vmatpush1.bf16.msra.mxu0 0
        %225 = vmatprep.subr.bf16.mxu0 0
        %226 = vmatpush1.bf16.msra.mxu0 0
        %227 = vmatprep.subr.bf16.mxu0 0
        %228 = vmatpush1.bf16.msra.mxu0 0
        %229 = vmatprep.mubr.bf16.mxu0 0
        %230 = vmatmul.mubr.bf16.gmra.mrb[0].mxu0 %v195
        %v231 = vpop.f32.mrb[0].mxu0
        %v232 = vadd.f32 0.0, %v231
        %v233 = vpop.f32.mrb[0].mxu0
        %v234 = vadd.f32 0.0, %v233
        %v235 = vpop.f32.mrb[0].mxu0
        %v236 = vpop.f32.mrb[0].mxu0
        %237 = vdwg.mxu0
        %v238 = vpack.c.bf16 %v232, %v232
        %v239 = vpack.c.bf16 %v234, %v234
        %241 = vrot.lane.b32.xlu0 %v238, 112
        %v242 = vpop.permute.xlu0 %241
        %243 = vrot.lane.b32.xlu0 %v238, 96
        %v244 = vpop.permute.xlu0 %243
        %245 = vrot.lane.b32.xlu0 %v238, 80
        %v246 = vpop.permute.xlu0 %245
        %v248 = vunpack.c.l.s4 1983009808
        %v249 = vunpack.c.0.s8 %v248
        %v250 = vlaneseq
        %v251 = vshrl.u32 %v250, 7
        %v252 = vsub.s32 %v249, %v251
        %v253 = vrot.slane %v238, %v252
        %v256 = vunpack.c.l.s4 1983009808
        %v257 = vunpack.c.0.s8 %v256
        %v258 = vlaneseq
        %v259 = vshrl.u32 %v258, 7
        %v260 = vsub.s32 %v257, %v259
        %v261 = vrot.slane %v244, %v260
        %v262 = vcombine.low %v253, %v261
        %v263 = vcombine.high %v253, %v261
        %v265 = vunpack.c.l.s4 1934713408
        %v266 = vunpack.c.0.s8 %v265
        %v267 = vlaneseq
        %v268 = vshrl.u32 %v267, 7
        %v269 = vsub.s32 %v266, %v268
        %v270 = vrot.slane %v262, %v269
        %v272 = vunpack.c.l.s4 1934713408
        %v273 = vunpack.c.0.s8 %v272
        %v274 = vlaneseq
        %v275 = vshrl.u32 %v274, 7
        %v276 = vsub.s32 %v273, %v275
        %v277 = vrot.slane %v263, %v276
        %v278 = vcombine.high %v270, 0
        %v279 = vcombine.high %v277, 0
        %v282 = vunpack.c.l.s4 1983009808
        %v283 = vunpack.c.0.s8 %v282
        %v284 = vlaneseq
        %v285 = vshrl.u32 %v284, 7
        %v286 = vsub.s32 %v283, %v285
        %v287 = vrot.slane %v242, %v286
        %v290 = vunpack.c.l.s4 1983009808
        %v291 = vunpack.c.0.s8 %v290
        %v292 = vlaneseq
        %v293 = vshrl.u32 %v292, 7
        %v294 = vsub.s32 %v291, %v293
        %v295 = vrot.slane %v246, %v294
        %v296 = vcombine.low %v287, %v295
        %v297 = vcombine.high %v287, %v295
        %v299 = vunpack.c.l.s4 1934713408
        %v300 = vunpack.c.0.s8 %v299
        %v301 = vlaneseq
        %v302 = vshrl.u32 %v301, 7
        %v303 = vsub.s32 %v300, %v302
        %v304 = vrot.slane %v296, %v303
        %v306 = vunpack.c.l.s4 1934713408
        %v307 = vunpack.c.0.s8 %v306
        %v308 = vlaneseq
        %v309 = vshrl.u32 %v308, 7
        %v310 = vsub.s32 %v307, %v309
        %v311 = vrot.slane %v297, %v310
        %v312 = vcombine.high %v304, 0
        %v313 = vcombine.high %v311, 0
        %v316 = vpack.i.b16 %v304, %v270
        %v318 = vshrl.u32 %v270, 16
        %v319 = vshrl.u32 %v304, 16
        %v320 = vpack.i.b16 %v319, %v318
        %v324 = vpack.i.b16 %v312, %v278
        %v326 = vshrl.u32 %v278, 16
        %v327 = vshrl.u32 %v312, 16
        %v328 = vpack.i.b16 %v327, %v326
        %v332 = vpack.i.b16 %v311, %v277
        %v334 = vshrl.u32 %v277, 16
        %v335 = vshrl.u32 %v311, 16
        %v336 = vpack.i.b16 %v335, %v334
        %v340 = vpack.i.b16 %v313, %v279
        %v342 = vshrl.u32 %v279, 16
        %v343 = vshrl.u32 %v313, 16
        %v344 = vpack.i.b16 %v343, %v342
        %v346 = vcombine.low %v316, %v332
        %v348 = vunpack.c.l.s4 1983009808
        %v349 = vunpack.c.0.s8 %v348
        %v350 = vlaneseq
        %v351 = vshrl.u32 %v350, 7
        %v352 = vsub.s32 %v349, %v351
        %v353 = vrot.slane %v346, %v352
        %v354 = vcombine.low %v324, %v340
        %v356 = vunpack.c.l.s4 1983009808
        %v357 = vunpack.c.0.s8 %v356
        %v358 = vlaneseq
        %v359 = vshrl.u32 %v358, 7
        %v360 = vsub.s32 %v357, %v359
        %v361 = vrot.slane %v354, %v360
        %v362 = vcombine.low %v353, %v361
        %v364 = vunpack.c.l.s4 1934713408
        %v365 = vunpack.c.0.s8 %v364
        %v366 = vlaneseq
        %v367 = vshrl.u32 %v366, 7
        %v368 = vsub.s32 %v365, %v367
        %v369 = vrot.slane %v362, %v368
        %v370 = vcombine.high %v369, 0
        %v371 = vcombine.low %v320, %v336
        %v373 = vunpack.c.l.s4 1983009808
        %v374 = vunpack.c.0.s8 %v373
        %v375 = vlaneseq
        %v376 = vshrl.u32 %v375, 7
        %v377 = vsub.s32 %v374, %v376
        %v378 = vrot.slane %v371, %v377
        %v379 = vcombine.low %v328, %v344
        %v381 = vunpack.c.l.s4 1983009808
        %v382 = vunpack.c.0.s8 %v381
        %v383 = vlaneseq
        %v384 = vshrl.u32 %v383, 7
        %v385 = vsub.s32 %v382, %v384
        %v386 = vrot.slane %v379, %v385
        %v387 = vcombine.low %v378, %v386
        %v389 = vunpack.c.l.s4 1934713408
        %v390 = vunpack.c.0.s8 %v389
        %v391 = vlaneseq
        %v392 = vshrl.u32 %v391, 7
        %v393 = vsub.s32 %v390, %v392
        %v394 = vrot.slane %v387, %v393
        %v395 = vcombine.high %v394, 0
        %v398 = vpack.i.b16 %v394, %v369
        %v399 = vshrl.u32 %v369, 16
        %v400 = vshrl.u32 %v394, 16
        %v401 = vpack.i.b16 %v400, %v399
        %v404 = vpack.i.b16 %v395, %v370
        %v405 = vshrl.u32 %v370, 16
        %v406 = vshrl.u32 %v395, 16
        %v407 = vpack.i.b16 %v406, %v405
        %408 = vrot.lane.b32.xlu0 %v238, 64
        %v409 = vpop.permute.xlu0 %408
        %410 = vrot.lane.b32.xlu0 %v242, 64
        %v411 = vpop.permute.xlu0 %410
        %412 = vrot.lane.b32.xlu0 %v244, 64
        %v413 = vpop.permute.xlu0 %412
        %414 = vrot.lane.b32.xlu0 %v246, 64
        %v415 = vpop.permute.xlu0 %414
        %v418 = vunpack.c.l.s4 1983009808
        %v419 = vunpack.c.0.s8 %v418
        %v420 = vlaneseq
        %v421 = vshrl.u32 %v420, 7
        %v422 = vsub.s32 %v419, %v421
        %v423 = vrot.slane %v409, %v422
        %v426 = vunpack.c.l.s4 1983009808
        %v427 = vunpack.c.0.s8 %v426
        %v428 = vlaneseq
        %v429 = vshrl.u32 %v428, 7
        %v430 = vsub.s32 %v427, %v429
        %v431 = vrot.slane %v413, %v430
        %v432 = vcombine.low %v423, %v431
        %v433 = vcombine.high %v423, %v431
        %v435 = vunpack.c.l.s4 1934713408
        %v436 = vunpack.c.0.s8 %v435
        %v437 = vlaneseq
        %v438 = vshrl.u32 %v437, 7
        %v439 = vsub.s32 %v436, %v438
        %v440 = vrot.slane %v432, %v439
        %v442 = vunpack.c.l.s4 1934713408
        %v443 = vunpack.c.0.s8 %v442
        %v444 = vlaneseq
        %v445 = vshrl.u32 %v444, 7
        %v446 = vsub.s32 %v443, %v445
        %v447 = vrot.slane %v433, %v446
        %v448 = vcombine.high %v440, 0
        %v449 = vcombine.high %v447, 0
        %v452 = vunpack.c.l.s4 1983009808
        %v453 = vunpack.c.0.s8 %v452
        %v454 = vlaneseq
        %v455 = vshrl.u32 %v454, 7
        %v456 = vsub.s32 %v453, %v455
        %v457 = vrot.slane %v411, %v456
        %v460 = vunpack.c.l.s4 1983009808
        %v461 = vunpack.c.0.s8 %v460
        %v462 = vlaneseq
        %v463 = vshrl.u32 %v462, 7
        %v464 = vsub.s32 %v461, %v463
        %v465 = vrot.slane %v415, %v464
        %v466 = vcombine.low %v457, %v465
        %v467 = vcombine.high %v457, %v465
        %v469 = vunpack.c.l.s4 1934713408
        %v470 = vunpack.c.0.s8 %v469
        %v471 = vlaneseq
        %v472 = vshrl.u32 %v471, 7
        %v473 = vsub.s32 %v470, %v472
        %v474 = vrot.slane %v466, %v473
        %v476 = vunpack.c.l.s4 1934713408
        %v477 = vunpack.c.0.s8 %v476
        %v478 = vlaneseq
        %v479 = vshrl.u32 %v478, 7
        %v480 = vsub.s32 %v477, %v479
        %v481 = vrot.slane %v467, %v480
        %v482 = vcombine.high %v474, 0
        %v483 = vcombine.high %v481, 0
        %v486 = vpack.i.b16 %v474, %v440
        %v488 = vshrl.u32 %v440, 16
        %v489 = vshrl.u32 %v474, 16
        %v490 = vpack.i.b16 %v489, %v488
        %v494 = vpack.i.b16 %v482, %v448
        %v496 = vshrl.u32 %v448, 16
        %v497 = vshrl.u32 %v482, 16
        %v498 = vpack.i.b16 %v497, %v496
        %v502 = vpack.i.b16 %v481, %v447
        %v504 = vshrl.u32 %v447, 16
        %v505 = vshrl.u32 %v481, 16
        %v506 = vpack.i.b16 %v505, %v504
        %v510 = vpack.i.b16 %v483, %v449
        %v512 = vshrl.u32 %v449, 16
        %v513 = vshrl.u32 %v483, 16
        %v514 = vpack.i.b16 %v513, %v512
        %v516 = vcombine.low %v486, %v502
        %v518 = vunpack.c.l.s4 1983009808
        %v519 = vunpack.c.0.s8 %v518
        %v520 = vlaneseq
        %v521 = vshrl.u32 %v520, 7
        %v522 = vsub.s32 %v519, %v521
        %v523 = vrot.slane %v516, %v522
        %v524 = vcombine.low %v494, %v510
        %v526 = vunpack.c.l.s4 1983009808
        %v527 = vunpack.c.0.s8 %v526
        %v528 = vlaneseq
        %v529 = vshrl.u32 %v528, 7
        %v530 = vsub.s32 %v527, %v529
        %v531 = vrot.slane %v524, %v530
        %v532 = vcombine.low %v523, %v531
        %v534 = vunpack.c.l.s4 1934713408
        %v535 = vunpack.c.0.s8 %v534
        %v536 = vlaneseq
        %v537 = vshrl.u32 %v536, 7
        %v538 = vsub.s32 %v535, %v537
        %v539 = vrot.slane %v532, %v538
        %v540 = vcombine.high %v539, 0
        %v541 = vcombine.low %v490, %v506
        %v543 = vunpack.c.l.s4 1983009808
        %v544 = vunpack.c.0.s8 %v543
        %v545 = vlaneseq
        %v546 = vshrl.u32 %v545, 7
        %v547 = vsub.s32 %v544, %v546
        %v548 = vrot.slane %v541, %v547
        %v549 = vcombine.low %v498, %v514
        %v551 = vunpack.c.l.s4 1983009808
        %v552 = vunpack.c.0.s8 %v551
        %v553 = vlaneseq
        %v554 = vshrl.u32 %v553, 7
        %v555 = vsub.s32 %v552, %v554
        %v556 = vrot.slane %v549, %v555
        %v557 = vcombine.low %v548, %v556
        %v559 = vunpack.c.l.s4 1934713408
        %v560 = vunpack.c.0.s8 %v559
        %v561 = vlaneseq
        %v562 = vshrl.u32 %v561, 7
        %v563 = vsub.s32 %v560, %v562
        %v564 = vrot.slane %v557, %v563
        %v565 = vcombine.high %v564, 0
        %v568 = vpack.i.b16 %v564, %v539
        %v569 = vshrl.u32 %v539, 16
        %v570 = vshrl.u32 %v564, 16
        %v571 = vpack.i.b16 %v570, %v569
        %v574 = vpack.i.b16 %v565, %v540
        %v575 = vshrl.u32 %v540, 16
        %v576 = vshrl.u32 %v565, 16
        %v577 = vpack.i.b16 %v576, %v575
        %579 = vrot.lane.b32.xlu0 %v239, 112
        %v580 = vpop.permute.xlu0 %579
        %581 = vrot.lane.b32.xlu0 %v239, 96
        %v582 = vpop.permute.xlu0 %581
        %583 = vrot.lane.b32.xlu0 %v239, 80
        %v584 = vpop.permute.xlu0 %583
        %v586 = vunpack.c.l.s4 1983009808
        %v587 = vunpack.c.0.s8 %v586
        %v588 = vlaneseq
        %v589 = vshrl.u32 %v588, 7
        %v590 = vsub.s32 %v587, %v589
        %v591 = vrot.slane %v239, %v590
        %v594 = vunpack.c.l.s4 1983009808
        %v595 = vunpack.c.0.s8 %v594
        %v596 = vlaneseq
        %v597 = vshrl.u32 %v596, 7
        %v598 = vsub.s32 %v595, %v597
        %v599 = vrot.slane %v582, %v598
        %v600 = vcombine.low %v591, %v599
        %v601 = vcombine.high %v591, %v599
        %v603 = vunpack.c.l.s4 1934713408
        %v604 = vunpack.c.0.s8 %v603
        %v605 = vlaneseq
        %v606 = vshrl.u32 %v605, 7
        %v607 = vsub.s32 %v604, %v606
        %v608 = vrot.slane %v600, %v607
        %v610 = vunpack.c.l.s4 1934713408
        %v611 = vunpack.c.0.s8 %v610
        %v612 = vlaneseq
        %v613 = vshrl.u32 %v612, 7
        %v614 = vsub.s32 %v611, %v613
        %v615 = vrot.slane %v601, %v614
        %v616 = vcombine.high %v608, 0
        %v617 = vcombine.high %v615, 0
        %v620 = vunpack.c.l.s4 1983009808
        %v621 = vunpack.c.0.s8 %v620
        %v622 = vlaneseq
        %v623 = vshrl.u32 %v622, 7
        %v624 = vsub.s32 %v621, %v623
        %v625 = vrot.slane %v580, %v624
        %v628 = vunpack.c.l.s4 1983009808
        %v629 = vunpack.c.0.s8 %v628
        %v630 = vlaneseq
        %v631 = vshrl.u32 %v630, 7
        %v632 = vsub.s32 %v629, %v631
        %v633 = vrot.slane %v584, %v632
        %v634 = vcombine.low %v625, %v633
        %v635 = vcombine.high %v625, %v633
        %v637 = vunpack.c.l.s4 1934713408
        %v638 = vunpack.c.0.s8 %v637
        %v639 = vlaneseq
        %v640 = vshrl.u32 %v639, 7
        %v641 = vsub.s32 %v638, %v640
        %v642 = vrot.slane %v634, %v641
        %v644 = vunpack.c.l.s4 1934713408
        %v645 = vunpack.c.0.s8 %v644
        %v646 = vlaneseq
        %v647 = vshrl.u32 %v646, 7
        %v648 = vsub.s32 %v645, %v647
        %v649 = vrot.slane %v635, %v648
        %v650 = vcombine.high %v642, 0
        %v651 = vcombine.high %v649, 0
        %v654 = vpack.i.b16 %v642, %v608
        %v656 = vshrl.u32 %v608, 16
        %v657 = vshrl.u32 %v642, 16
        %v658 = vpack.i.b16 %v657, %v656
        %v662 = vpack.i.b16 %v650, %v616
        %v664 = vshrl.u32 %v616, 16
        %v665 = vshrl.u32 %v650, 16
        %v666 = vpack.i.b16 %v665, %v664
        %v670 = vpack.i.b16 %v649, %v615
        %v672 = vshrl.u32 %v615, 16
        %v673 = vshrl.u32 %v649, 16
        %v674 = vpack.i.b16 %v673, %v672
        %v678 = vpack.i.b16 %v651, %v617
        %v680 = vshrl.u32 %v617, 16
        %v681 = vshrl.u32 %v651, 16
        %v682 = vpack.i.b16 %v681, %v680
        %v684 = vcombine.low %v654, %v670
        %v686 = vunpack.c.l.s4 1983009808
        %v687 = vunpack.c.0.s8 %v686
        %v688 = vlaneseq
        %v689 = vshrl.u32 %v688, 7
        %v690 = vsub.s32 %v687, %v689
        %v691 = vrot.slane %v684, %v690
        %v692 = vcombine.low %v662, %v678
        %v694 = vunpack.c.l.s4 1983009808
        %v695 = vunpack.c.0.s8 %v694
        %v696 = vlaneseq
        %v697 = vshrl.u32 %v696, 7
        %v698 = vsub.s32 %v695, %v697
        %v699 = vrot.slane %v692, %v698
        %v700 = vcombine.low %v691, %v699
        %v702 = vunpack.c.l.s4 1934713408
        %v703 = vunpack.c.0.s8 %v702
        %v704 = vlaneseq
        %v705 = vshrl.u32 %v704, 7
        %v706 = vsub.s32 %v703, %v705
        %v707 = vrot.slane %v700, %v706
        %v708 = vcombine.high %v707, 0
        %v709 = vcombine.low %v658, %v674
        %v711 = vunpack.c.l.s4 1983009808
        %v712 = vunpack.c.0.s8 %v711
        %v713 = vlaneseq
        %v714 = vshrl.u32 %v713, 7
        %v715 = vsub.s32 %v712, %v714
        %v716 = vrot.slane %v709, %v715
        %v717 = vcombine.low %v666, %v682
        %v719 = vunpack.c.l.s4 1983009808
        %v720 = vunpack.c.0.s8 %v719
        %v721 = vlaneseq
        %v722 = vshrl.u32 %v721, 7
        %v723 = vsub.s32 %v720, %v722
        %v724 = vrot.slane %v717, %v723
        %v725 = vcombine.low %v716, %v724
        %v727 = vunpack.c.l.s4 1934713408
        %v728 = vunpack.c.0.s8 %v727
        %v729 = vlaneseq
        %v730 = vshrl.u32 %v729, 7
        %v731 = vsub.s32 %v728, %v730
        %v732 = vrot.slane %v725, %v731
        %v733 = vcombine.high %v732, 0
        %v736 = vpack.i.b16 %v732, %v707
        %v737 = vshrl.u32 %v707, 16
        %v738 = vshrl.u32 %v732, 16
        %v739 = vpack.i.b16 %v738, %v737
        %v742 = vpack.i.b16 %v733, %v708
        %v743 = vshrl.u32 %v708, 16
        %v744 = vshrl.u32 %v733, 16
        %v745 = vpack.i.b16 %v744, %v743
        %vm746 = vcmask 130048
        %v748 = vsel %vm746, %v398, 0
        %v751 = vsel %vm746, %v568, 0
        %753 = vmatprep.subr.bf16.mxu0 0
        %754 = vmatpush1.bf16.xpose.msra.mxu0 %v751
        %755 = vmatprep.subr.bf16.mxu0 0
        %756 = vmatpush1.bf16.xpose.msra.mxu0 0
        %757 = vmatprep.subr.bf16.mxu0 0
        %758 = vmatpush1.bf16.xpose.msra.mxu0 0
        %759 = vmatprep.subr.bf16.mxu0 0
        %760 = vmatpush1.bf16.xpose.msra.mxu0 0
        %761 = vmatprep.subr.bf16.mxu0 0
        %762 = vmatpush1.bf16.xpose.msra.mxu0 0
        %763 = vmatprep.subr.bf16.mxu0 0
        %764 = vmatpush1.bf16.xpose.msra.mxu0 0
        %765 = vmatprep.subr.bf16.mxu0 0
        %766 = vmatpush1.bf16.xpose.msra.mxu0 0
        %767 = vmatprep.subr.bf16.mxu0 0
        %768 = vmatpush1.bf16.xpose.msra.mxu0 0
        %769 = vmatprep.subr.bf16.mxu0 0
        %770 = vmatpush1.bf16.xpose.msra.mxu0 0
        %771 = vmatprep.subr.bf16.mxu0 0
        %772 = vmatpush1.bf16.xpose.msra.mxu0 0
        %773 = vmatprep.subr.bf16.mxu0 0
        %774 = vmatpush1.bf16.xpose.msra.mxu0 0
        %775 = vmatprep.subr.bf16.mxu0 0
        %776 = vmatpush1.bf16.xpose.msra.mxu0 0
        %777 = vmatprep.subr.bf16.mxu0 0
        %778 = vmatpush1.bf16.xpose.msra.mxu0 0
        %779 = vmatprep.subr.bf16.mxu0 0
        %780 = vmatpush1.bf16.xpose.msra.mxu0 0
        %781 = vmatprep.subr.bf16.mxu0 0
        %782 = vmatpush1.bf16.xpose.msra.mxu0 0
        %783 = vmatprep.subr.bf16.mxu0 0
        %784 = vmatpush1.bf16.xpose.msra.mxu0 0
        %785 = vmatprep.mubr.bf16.mxu0 0
        %786 = vmatmul.mubr.bf16.gmra.mrb[0].mxu0 %v748
        %v787 = vpop.f32.mrb[0].mxu0
        %v788 = vadd.f32 0.0, %v787
        %v789 = vpop.f32.mrb[0].mxu0
        %v790 = vpop.f32.mrb[0].mxu0
        %v791 = vpop.f32.mrb[0].mxu0
        %792 = vdwg.mxu0
        %v794 = vsel %vm746, %v401, 0
        %v797 = vsel %vm746, %v571, 0
        %799 = vmatprep.subr.bf16.mxu0 0
        %800 = vmatpush1.bf16.xpose.msra.mxu0 %v797
        %801 = vmatprep.subr.bf16.mxu0 0
        %802 = vmatpush1.bf16.xpose.msra.mxu0 0
        %803 = vmatprep.subr.bf16.mxu0 0
        %804 = vmatpush1.bf16.xpose.msra.mxu0 0
        %805 = vmatprep.subr.bf16.mxu0 0
        %806 = vmatpush1.bf16.xpose.msra.mxu0 0
        %807 = vmatprep.subr.bf16.mxu0 0
        %808 = vmatpush1.bf16.xpose.msra.mxu0 0
        %809 = vmatprep.subr.bf16.mxu0 0
        %810 = vmatpush1.bf16.xpose.msra.mxu0 0
        %811 = vmatprep.subr.bf16.mxu0 0
        %812 = vmatpush1.bf16.xpose.msra.mxu0 0
        %813 = vmatprep.subr.bf16.mxu0 0
        %814 = vmatpush1.bf16.xpose.msra.mxu0 0
        %815 = vmatprep.subr.bf16.mxu0 0
        %816 = vmatpush1.bf16.xpose.msra.mxu0 0
        %817 = vmatprep.subr.bf16.mxu0 0
        %818 = vmatpush1.bf16.xpose.msra.mxu0 0
        %819 = vmatprep.subr.bf16.mxu0 0
        %820 = vmatpush1.bf16.xpose.msra.mxu0 0
        %821 = vmatprep.subr.bf16.mxu0 0
        %822 = vmatpush1.bf16.xpose.msra.mxu0 0
        %823 = vmatprep.subr.bf16.mxu0 0
        %824 = vmatpush1.bf16.xpose.msra.mxu0 0
        %825 = vmatprep.subr.bf16.mxu0 0
        %826 = vmatpush1.bf16.xpose.msra.mxu0 0
        %827 = vmatprep.subr.bf16.mxu0 0
        %828 = vmatpush1.bf16.xpose.msra.mxu0 0
        %829 = vmatprep.subr.bf16.mxu0 0
        %830 = vmatpush1.bf16.xpose.msra.mxu0 0
        %831 = vmatprep.mubr.bf16.mxu0 0
        %832 = vmatmul.mubr.bf16.gmra.mrb[0].mxu0 %v794
        %v833 = vpop.f32.mrb[0].mxu0
        %v834 = vadd.f32 0.0, %v833
        %v835 = vpop.f32.mrb[0].mxu0
        %v836 = vpop.f32.mrb[0].mxu0
        %v837 = vpop.f32.mrb[0].mxu0
        %838 = vdwg.mxu0
        %v840 = vsel %vm746, %v404, 0
        %v843 = vsel %vm746, %v574, 0
        %845 = vmatprep.subr.bf16.mxu0 0
        %846 = vmatpush1.bf16.xpose.msra.mxu0 %v843
        %847 = vmatprep.subr.bf16.mxu0 0
        %848 = vmatpush1.bf16.xpose.msra.mxu0 0
        %849 = vmatprep.subr.bf16.mxu0 0
        %850 = vmatpush1.bf16.xpose.msra.mxu0 0
        %851 = vmatprep.subr.bf16.mxu0 0
        %852 = vmatpush1.bf16.xpose.msra.mxu0 0
        %853 = vmatprep.subr.bf16.mxu0 0
        %854 = vmatpush1.bf16.xpose.msra.mxu0 0
        %855 = vmatprep.subr.bf16.mxu0 0
        %856 = vmatpush1.bf16.xpose.msra.mxu0 0
        %857 = vmatprep.subr.bf16.mxu0 0
        %858 = vmatpush1.bf16.xpose.msra.mxu0 0
        %859 = vmatprep.subr.bf16.mxu0 0
        %860 = vmatpush1.bf16.xpose.msra.mxu0 0
        %861 = vmatprep.subr.bf16.mxu0 0
        %862 = vmatpush1.bf16.xpose.msra.mxu0 0
        %863 = vmatprep.subr.bf16.mxu0 0
        %864 = vmatpush1.bf16.xpose.msra.mxu0 0
        %865 = vmatprep.subr.bf16.mxu0 0
        %866 = vmatpush1.bf16.xpose.msra.mxu0 0
        %867 = vmatprep.subr.bf16.mxu0 0
        %868 = vmatpush1.bf16.xpose.msra.mxu0 0
        %869 = vmatprep.subr.bf16.mxu0 0
        %870 = vmatpush1.bf16.xpose.msra.mxu0 0
        %871 = vmatprep.subr.bf16.mxu0 0
        %872 = vmatpush1.bf16.xpose.msra.mxu0 0
        %873 = vmatprep.subr.bf16.mxu0 0
        %874 = vmatpush1.bf16.xpose.msra.mxu0 0
        %875 = vmatprep.subr.bf16.mxu0 0
        %876 = vmatpush1.bf16.xpose.msra.mxu0 0
        %877 = vmatprep.mubr.bf16.mxu0 0
        %878 = vmatmul.mubr.bf16.gmra.mrb[0].mxu0 %v840
        %v879 = vpop.f32.mrb[0].mxu0
        %v880 = vadd.f32 0.0, %v879
        %v881 = vpop.f32.mrb[0].mxu0
        %v882 = vpop.f32.mrb[0].mxu0
        %v883 = vpop.f32.mrb[0].mxu0
        %884 = vdwg.mxu0
        %v886 = vsel %vm746, %v407, 0
        %v889 = vsel %vm746, %v577, 0
        %891 = vmatprep.subr.bf16.mxu0 0
        %892 = vmatpush1.bf16.xpose.msra.mxu0 %v889
        %893 = vmatprep.subr.bf16.mxu0 0
        %894 = vmatpush1.bf16.xpose.msra.mxu0 0
        %895 = vmatprep.subr.bf16.mxu0 0
        %896 = vmatpush1.bf16.xpose.msra.mxu0 0
        %897 = vmatprep.subr.bf16.mxu0 0
        %898 = vmatpush1.bf16.xpose.msra.mxu0 0
        %899 = vmatprep.subr.bf16.mxu0 0
        %900 = vmatpush1.bf16.xpose.msra.mxu0 0
        %901 = vmatprep.subr.bf16.mxu0 0
        %902 = vmatpush1.bf16.xpose.msra.mxu0 0
        %903 = vmatprep.subr.bf16.mxu0 0
        %904 = vmatpush1.bf16.xpose.msra.mxu0 0
        %905 = vmatprep.subr.bf16.mxu0 0
        %906 = vmatpush1.bf16.xpose.msra.mxu0 0
        %907 = vmatprep.subr.bf16.mxu0 0
        %908 = vmatpush1.bf16.xpose.msra.mxu0 0
        %909 = vmatprep.subr.bf16.mxu0 0
        %910 = vmatpush1.bf16.xpose.msra.mxu0 0
        %911 = vmatprep.subr.bf16.mxu0 0
        %912 = vmatpush1.bf16.xpose.msra.mxu0 0
        %913 = vmatprep.subr.bf16.mxu0 0
        %914 = vmatpush1.bf16.xpose.msra.mxu0 0
        %915 = vmatprep.subr.bf16.mxu0 0
        %916 = vmatpush1.bf16.xpose.msra.mxu0 0
        %917 = vmatprep.subr.bf16.mxu0 0
        %918 = vmatpush1.bf16.xpose.msra.mxu0 0
        %919 = vmatprep.subr.bf16.mxu0 0
        %920 = vmatpush1.bf16.xpose.msra.mxu0 0
        %921 = vmatprep.subr.bf16.mxu0 0
        %922 = vmatpush1.bf16.xpose.msra.mxu0 0
        %923 = vmatprep.mubr.bf16.mxu0 0
        %924 = vmatmul.mubr.bf16.gmra.mrb[0].mxu0 %v886
        %v925 = vpop.f32.mrb[0].mxu0
        %v926 = vadd.f32 0.0, %v925
        %v927 = vpop.f32.mrb[0].mxu0
        %v928 = vpop.f32.mrb[0].mxu0
        %v929 = vpop.f32.mrb[0].mxu0
        %930 = vdwg.mxu0
        %v931 = vlaneseq
        %v932 = vshrl.u32 %v931, 7
        %v933 = vlaneseq
        %v934 = vand.u32 %v933, 127
        %vm935 = vcmp.eq.s32.totalorder %v932, %v934
        %v936 = vsel %vm935, 1, 0
        %vm937 = vcmp.eq.s32.totalorder %v936, 1
        %v938 = vsel %vm937, -3.4028235e+38, %v788
        %v939 = vsel %vm937, -3.4028235e+38, %v834
        %v940 = vsel %vm937, -3.4028235e+38, %v880
        %v941 = vsel %vm937, -3.4028235e+38, %v926
        %vm942 = vcmask 64512
        %v943 = vsel %vm942, %v938, -inf
        %944 = vmax.xlane.f32.xlu0 %v943
        %v945 = vpop.xlane.xlu0 %944
        %v946 = vsel %vm942, %v939, -inf
        %947 = vmax.xlane.f32.xlu0 %v946
        %v948 = vpop.xlane.xlu0 %947
        %v949 = vsel %vm942, %v940, -inf
        %950 = vmax.xlane.f32.xlu0 %v949
        %v951 = vpop.xlane.xlu0 %950
        %v952 = vsel %vm942, %v941, -inf
        %953 = vmax.xlane.f32.xlu0 %v952
        %v954 = vpop.xlane.xlu0 %953
        %v955 = vsub.f32 %v938, %v945
        %v956 = vsub.f32 %v939, %v948
        %v957 = vsub.f32 %v940, %v951
        %v958 = vsub.f32 %v941, %v954
        %v959 = vmul.f32 %v955, 1.442695
        %v960 = vpow.pop %v959
        %v961 = vmul.f32 %v956, 1.442695
        %v962 = vpow.pop %v961
        %v963 = vmul.f32 %v957, 1.442695
        %v964 = vpow.pop %v963
        %v965 = vmul.f32 %v958, 1.442695
        %v966 = vpow.pop %v965
        %v967 = vsel %vm942, %v960, 0.0
        %968 = vadd.xlane.f32.xlu0 %v967
        %v969 = vpop.xlane.xlu0 %968
        %v970 = vsel %vm942, %v962, 0.0
        %971 = vadd.xlane.f32.xlu0 %v970
        %v972 = vpop.xlane.xlu0 %971
        %v973 = vsel %vm942, %v964, 0.0
        %974 = vadd.xlane.f32.xlu0 %v973
        %v975 = vpop.xlane.xlu0 %974
        %v976 = vsel %vm942, %v966, 0.0
        %977 = vadd.xlane.f32.xlu0 %v976
        %v978 = vpop.xlane.xlu0 %977
        %v979 = vrcp.pop %v969
        %v980 = vrcp.pop %v972
        %v981 = vrcp.pop %v975
        %v982 = vrcp.pop %v978
        %v983 = vmul.f32 %v960, %v979
        %v984 = vmul.f32 %v962, %v980
        %v985 = vmul.f32 %v964, %v981
        %v986 = vmul.f32 %v966, %v982
        %v987 = vpack.c.bf16 %v983, %v983
        %v988 = vpack.c.bf16 %v984, %v984
        %v989 = vpack.c.bf16 %v985, %v985
        %v990 = vpack.c.bf16 %v986, %v986
        %v992 = vsel %vm942, %v987, 0
        %vm994 = vcmask 1043456
        %v996 = vsel %vm994, %v736, 0
        %998 = vmatprep.subr.bf16.mxu0 0
        %999 = vmatpush1.bf16.msra.mxu0 %v996
        %1000 = vmatprep.subr.bf16.mxu0 0
        %1001 = vmatpush1.bf16.msra.mxu0 0
        %1002 = vmatprep.subr.bf16.mxu0 0
        %1003 = vmatpush1.bf16.msra.mxu0 0
        %1004 = vmatprep.subr.bf16.mxu0 0
        %1005 = vmatpush1.bf16.msra.mxu0 0
        %1006 = vmatprep.subr.bf16.mxu0 0
        %1007 = vmatpush1.bf16.msra.mxu0 0
        %1008 = vmatprep.subr.bf16.mxu0 0
        %1009 = vmatpush1.bf16.msra.mxu0 0
        %1010 = vmatprep.subr.bf16.mxu0 0
        %1011 = vmatpush1.bf16.msra.mxu0 0
        %1012 = vmatprep.subr.bf16.mxu0 0
        %1013 = vmatpush1.bf16.msra.mxu0 0
        %1014 = vmatprep.subr.bf16.mxu0 0
        %1015 = vmatpush1.bf16.msra.mxu0 0
        %1016 = vmatprep.subr.bf16.mxu0 0
        %1017 = vmatpush1.bf16.msra.mxu0 0
        %1018 = vmatprep.subr.bf16.mxu0 0
        %1019 = vmatpush1.bf16.msra.mxu0 0
        %1020 = vmatprep.subr.bf16.mxu0 0
        %1021 = vmatpush1.bf16.msra.mxu0 0
        %1022 = vmatprep.subr.bf16.mxu0 0
        %1023 = vmatpush1.bf16.msra.mxu0 0
        %1024 = vmatprep.subr.bf16.mxu0 0
        %1025 = vmatpush1.bf16.msra.mxu0 0
        %1026 = vmatprep.subr.bf16.mxu0 0
        %1027 = vmatpush1.bf16.msra.mxu0 0
        %1028 = vmatprep.subr.bf16.mxu0 0
        %1029 = vmatpush1.bf16.msra.mxu0 0
        %1030 = vmatprep.mubr.bf16.mxu0 0
        %1031 = vmatmul.mubr.bf16.gmra.mrb[0].mxu0 %v992
        %v1032 = vpop.f32.mrb[0].mxu0
        %v1033 = vadd.f32 0.0, %v1032
        %v1034 = vpop.f32.mrb[0].mxu0
        %v1035 = vpop.f32.mrb[0].mxu0
        %v1036 = vpop.f32.mrb[0].mxu0
        %1037 = vdwg.mxu0
        %v1039 = vsel %vm942, %v988, 0
        %v1042 = vsel %vm994, %v739, 0
        %1044 = vmatprep.subr.bf16.mxu0 0
        %1045 = vmatpush1.bf16.msra.mxu0 %v1042
        %1046 = vmatprep.subr.bf16.mxu0 0
        %1047 = vmatpush1.bf16.msra.mxu0 0
        %1048 = vmatprep.subr.bf16.mxu0 0
        %1049 = vmatpush1.bf16.msra.mxu0 0
        %1050 = vmatprep.subr.bf16.mxu0 0
        %1051 = vmatpush1.bf16.msra.mxu0 0
        %1052 = vmatprep.subr.bf16.mxu0 0
        %1053 = vmatpush1.bf16.msra.mxu0 0
        %1054 = vmatprep.subr.bf16.mxu0 0
        %1055 = vmatpush1.bf16.msra.mxu0 0
        %1056 = vmatprep.subr.bf16.mxu0 0
        %1057 = vmatpush1.bf16.msra.mxu0 0
        %1058 = vmatprep.subr.bf16.mxu0 0
        %1059 = vmatpush1.bf16.msra.mxu0 0
        %1060 = vmatprep.subr.bf16.mxu0 0
        %1061 = vmatpush1.bf16.msra.mxu0 0
        %1062 = vmatprep.subr.bf16.mxu0 0
        %1063 = vmatpush1.bf16.msra.mxu0 0
        %1064 = vmatprep.subr.bf16.mxu0 0
        %1065 = vmatpush1.bf16.msra.mxu0 0
        %1066 = vmatprep.subr.bf16.mxu0 0
        %1067 = vmatpush1.bf16.msra.mxu0 0
        %1068 = vmatprep.subr.bf16.mxu0 0
        %1069 = vmatpush1.bf16.msra.mxu0 0
        %1070 = vmatprep.subr.bf16.mxu0 0
        %1071 = vmatpush1.bf16.msra.mxu0 0
        %1072 = vmatprep.subr.bf16.mxu0 0
        %1073 = vmatpush1.bf16.msra.mxu0 0
        %1074 = vmatprep.subr.bf16.mxu0 0
        %1075 = vmatpush1.bf16.msra.mxu0 0
        %1076 = vmatprep.mubr.bf16.mxu0 0
        %1077 = vmatmul.mubr.bf16.gmra.mrb[0].mxu0 %v1039
        %v1078 = vpop.f32.mrb[0].mxu0
        %v1079 = vadd.f32 0.0, %v1078
        %v1080 = vpop.f32.mrb[0].mxu0
        %v1081 = vpop.f32.mrb[0].mxu0
        %v1082 = vpop.f32.mrb[0].mxu0
        %1083 = vdwg.mxu0
        %v1085 = vsel %vm942, %v989, 0
        %v1088 = vsel %vm994, %v742, 0
        %1090 = vmatprep.subr.bf16.mxu0 0
        %1091 = vmatpush1.bf16.msra.mxu0 %v1088
        %1092 = vmatprep.subr.bf16.mxu0 0
        %1093 = vmatpush1.bf16.msra.mxu0 0
        %1094 = vmatprep.subr.bf16.mxu0 0
        %1095 = vmatpush1.bf16.msra.mxu0 0
        %1096 = vmatprep.subr.bf16.mxu0 0
        %1097 = vmatpush1.bf16.msra.mxu0 0
        %1098 = vmatprep.subr.bf16.mxu0 0
        %1099 = vmatpush1.bf16.msra.mxu0 0
        %1100 = vmatprep.subr.bf16.mxu0 0
        %1101 = vmatpush1.bf16.msra.mxu0 0
        %1102 = vmatprep.subr.bf16.mxu0 0
        %1103 = vmatpush1.bf16.msra.mxu0 0
        %1104 = vmatprep.subr.bf16.mxu0 0
        %1105 = vmatpush1.bf16.msra.mxu0 0
        %1106 = vmatprep.subr.bf16.mxu0 0
        %1107 = vmatpush1.bf16.msra.mxu0 0
        %1108 = vmatprep.subr.bf16.mxu0 0
        %1109 = vmatpush1.bf16.msra.mxu0 0
        %1110 = vmatprep.subr.bf16.mxu0 0
        %1111 = vmatpush1.bf16.msra.mxu0 0
        %1112 = vmatprep.subr.bf16.mxu0 0
        %1113 = vmatpush1.bf16.msra.mxu0 0
        %1114 = vmatprep.subr.bf16.mxu0 0
        %1115 = vmatpush1.bf16.msra.mxu0 0
        %1116 = vmatprep.subr.bf16.mxu0 0
        %1117 = vmatpush1.bf16.msra.mxu0 0
        %1118 = vmatprep.subr.bf16.mxu0 0
        %1119 = vmatpush1.bf16.msra.mxu0 0
        %1120 = vmatprep.subr.bf16.mxu0 0
        %1121 = vmatpush1.bf16.msra.mxu0 0
        %1122 = vmatprep.mubr.bf16.mxu0 0
        %1123 = vmatmul.mubr.bf16.gmra.mrb[0].mxu0 %v1085
        %v1124 = vpop.f32.mrb[0].mxu0
        %v1125 = vadd.f32 0.0, %v1124
        %v1126 = vpop.f32.mrb[0].mxu0
        %v1127 = vpop.f32.mrb[0].mxu0
        %v1128 = vpop.f32.mrb[0].mxu0
        %1129 = vdwg.mxu0
        %v1131 = vsel %vm942, %v990, 0
        %v1134 = vsel %vm994, %v745, 0
        %1136 = vmatprep.subr.bf16.mxu0 0
        %1137 = vmatpush1.bf16.msra.mxu0 %v1134
        %1138 = vmatprep.subr.bf16.mxu0 0
        %1139 = vmatpush1.bf16.msra.mxu0 0
        %1140 = vmatprep.subr.bf16.mxu0 0
        %1141 = vmatpush1.bf16.msra.mxu0 0
        %1142 = vmatprep.subr.bf16.mxu0 0
        %1143 = vmatpush1.bf16.msra.mxu0 0
        %1144 = vmatprep.subr.bf16.mxu0 0
        %1145 = vmatpush1.bf16.msra.mxu0 0
        %1146 = vmatprep.subr.bf16.mxu0 0
        %1147 = vmatpush1.bf16.msra.mxu0 0
        %1148 = vmatprep.subr.bf16.mxu0 0
        %1149 = vmatpush1.bf16.msra.mxu0 0
        %1150 = vmatprep.subr.bf16.mxu0 0
        %1151 = vmatpush1.bf16.msra.mxu0 0
        %1152 = vmatprep.subr.bf16.mxu0 0
        %1153 = vmatpush1.bf16.msra.mxu0 0
        %1154 = vmatprep.subr.bf16.mxu0 0
        %1155 = vmatpush1.bf16.msra.mxu0 0
        %1156 = vmatprep.subr.bf16.mxu0 0
        %1157 = vmatpush1.bf16.msra.mxu0 0
        %1158 = vmatprep.subr.bf16.mxu0 0
        %1159 = vmatpush1.bf16.msra.mxu0 0
        %1160 = vmatprep.subr.bf16.mxu0 0
        %1161 = vmatpush1.bf16.msra.mxu0 0
        %1162 = vmatprep.subr.bf16.mxu0 0
        %1163 = vmatpush1.bf16.msra.mxu0 0
        %1164 = vmatprep.subr.bf16.mxu0 0
        %1165 = vmatpush1.bf16.msra.mxu0 0
        %1166 = vmatprep.subr.bf16.mxu0 0
        %1167 = vmatpush1.bf16.msra.mxu0 0
        %1168 = vmatprep.mubr.bf16.mxu0 0
        %1169 = vmatmul.mubr.bf16.gmra.mrb[0].mxu0 %v1131
        %v1170 = vpop.f32.mrb[0].mxu0
        %v1171 = vadd.f32 0.0, %v1170
        %v1172 = vpop.f32.mrb[0].mxu0
        %v1173 = vpop.f32.mrb[0].mxu0
        %v1174 = vpop.f32.mrb[0].mxu0
        %1175 = vdwg.mxu0
        %v1176 = vcombine.low %v1033, %v1125
        %v1177 = vcombine.high %v1033, %v1125
        %v1179 = vunpack.c.l.s4 1983009808
        %v1180 = vunpack.c.0.s8 %v1179
        %v1181 = vlaneseq
        %v1182 = vshrl.u32 %v1181, 7
        %v1183 = vsub.s32 %v1180, %v1182
        %v1184 = vrot.slane %v1176, %v1183
        %v1186 = vunpack.c.l.s4 1983009808
        %v1187 = vunpack.c.0.s8 %v1186
        %v1188 = vlaneseq
        %v1189 = vshrl.u32 %v1188, 7
        %v1190 = vsub.s32 %v1187, %v1189
        %v1191 = vrot.slane %v1177, %v1190
        %v1192 = vcombine.low %v1079, %v1171
        %v1193 = vcombine.high %v1079, %v1171
        %v1195 = vunpack.c.l.s4 1983009808
        %v1196 = vunpack.c.0.s8 %v1195
        %v1197 = vlaneseq
        %v1198 = vshrl.u32 %v1197, 7
        %v1199 = vsub.s32 %v1196, %v1198
        %v1200 = vrot.slane %v1192, %v1199
        %v1202 = vunpack.c.l.s4 1983009808
        %v1203 = vunpack.c.0.s8 %v1202
        %v1204 = vlaneseq
        %v1205 = vshrl.u32 %v1204, 7
        %v1206 = vsub.s32 %v1203, %v1205
        %v1207 = vrot.slane %v1193, %v1206
        %v1208 = vcombine.low %v1184, %v1200
        %v1209 = vcombine.high %v1184, %v1200
        %v1211 = vunpack.c.l.s4 1934713408
        %v1212 = vunpack.c.0.s8 %v1211
        %v1213 = vlaneseq
        %v1214 = vshrl.u32 %v1213, 7
        %v1215 = vsub.s32 %v1212, %v1214
        %v1216 = vrot.slane %v1208, %v1215
        %v1218 = vunpack.c.l.s4 1934713408
        %v1219 = vunpack.c.0.s8 %v1218
        %v1220 = vlaneseq
        %v1221 = vshrl.u32 %v1220, 7
        %v1222 = vsub.s32 %v1219, %v1221
        %v1223 = vrot.slane %v1209, %v1222
        %v1224 = vcombine.low %v1191, %v1207
        %v1225 = vcombine.high %v1191, %v1207
        %v1227 = vunpack.c.l.s4 1934713408
        %v1228 = vunpack.c.0.s8 %v1227
        %v1229 = vlaneseq
        %v1230 = vshrl.u32 %v1229, 7
        %v1231 = vsub.s32 %v1228, %v1230
        %v1232 = vrot.slane %v1224, %v1231
        %v1234 = vunpack.c.l.s4 1934713408
        %v1235 = vunpack.c.0.s8 %v1234
        %v1236 = vlaneseq
        %v1237 = vshrl.u32 %v1236, 7
        %v1238 = vsub.s32 %v1235, %v1237
        %v1239 = vrot.slane %v1225, %v1238
        %v1240 = vcombine.high %v1216, 0.0
        %v1241 = vcombine.high %v1223, 0.0
        %v1242 = vcombine.high %v1232, 0.0
        %v1243 = vcombine.high %v1239, 0.0
        %v1244 = vcombine.low %v1216, %v1223
        %v1246 = vunpack.c.l.s4 1983009808
        %v1247 = vunpack.c.0.s8 %v1246
        %v1248 = vlaneseq
        %v1249 = vshrl.u32 %v1248, 7
        %v1250 = vsub.s32 %v1247, %v1249
        %v1251 = vrot.slane %v1244, %v1250
        %v1252 = vcombine.low %v1240, %v1241
        %v1254 = vunpack.c.l.s4 1983009808
        %v1255 = vunpack.c.0.s8 %v1254
        %v1256 = vlaneseq
        %v1257 = vshrl.u32 %v1256, 7
        %v1258 = vsub.s32 %v1255, %v1257
        %v1259 = vrot.slane %v1252, %v1258
        %v1260 = vcombine.low %v1232, %v1239
        %v1262 = vunpack.c.l.s4 1983009808
        %v1263 = vunpack.c.0.s8 %v1262
        %v1264 = vlaneseq
        %v1265 = vshrl.u32 %v1264, 7
        %v1266 = vsub.s32 %v1263, %v1265
        %v1267 = vrot.slane %v1260, %v1266
        %v1268 = vcombine.low %v1242, %v1243
        %v1270 = vunpack.c.l.s4 1983009808
        %v1271 = vunpack.c.0.s8 %v1270
        %v1272 = vlaneseq
        %v1273 = vshrl.u32 %v1272, 7
        %v1274 = vsub.s32 %v1271, %v1273
        %v1275 = vrot.slane %v1268, %v1274
        %v1276 = vcombine.low %v1251, %v1259
        %v1277 = vcombine.high %v1251, %v1259
        %v1279 = vunpack.c.l.s4 1934713408
        %v1280 = vunpack.c.0.s8 %v1279
        %v1281 = vlaneseq
        %v1282 = vshrl.u32 %v1281, 7
        %v1283 = vsub.s32 %v1280, %v1282
        %v1284 = vrot.slane %v1276, %v1283
        %v1286 = vunpack.c.l.s4 1934713408
        %v1287 = vunpack.c.0.s8 %v1286
        %v1288 = vlaneseq
        %v1289 = vshrl.u32 %v1288, 7
        %v1290 = vsub.s32 %v1287, %v1289
        %v1291 = vrot.slane %v1277, %v1290
        %v1292 = vcombine.low %v1267, %v1275
        %v1293 = vcombine.high %v1267, %v1275
        %v1295 = vunpack.c.l.s4 1934713408
        %v1296 = vunpack.c.0.s8 %v1295
        %v1297 = vlaneseq
        %v1298 = vshrl.u32 %v1297, 7
        %v1299 = vsub.s32 %v1296, %v1298
        %v1300 = vrot.slane %v1292, %v1299
        %v1302 = vunpack.c.l.s4 1934713408
        %v1303 = vunpack.c.0.s8 %v1302
        %v1304 = vlaneseq
        %v1305 = vshrl.u32 %v1304, 7
        %v1306 = vsub.s32 %v1303, %v1305
        %v1307 = vrot.slane %v1293, %v1306
        %v1308 = vcombine.low %v1284, %v1300
        %v1309 = vcombine.high %v1284, %v1300
        %v1310 = vcombine.low %v1291, %v1307
        %v1311 = vcombine.high %v1291, %v1307
        %1313 = vrot.lane.b32.xlu0 %v1309, 16
        %v1314 = vpop.permute.xlu0 %1313
        %1317 = vrot.lane.b32.xlu0 %v1310, 32
        %v1318 = vpop.permute.xlu0 %1317
        %1321 = vrot.lane.b32.xlu0 %v1311, 48
        %v1322 = vpop.permute.xlu0 %1321
        %v1324 = vsel %vm746, %v1308, %v1314
        %v1325 = vsel %vm193, %v1324, %v1318
        %vm1326 = vcmask 392192
        %v1327 = vsel %vm1326, %v1325, %v1322
        %v1328 = vpack.c.bf16 %v1327, %v1327
        %v1329 = vld [vmem:[%s2] sm:$0xf]
        %v1330 = vld [vmem:[%s2 + $0x4] sm:$0xf]
        %v1331 = vld [vmem:[%s2 + $0x8] sm:$0xf]
        %v1332 = vld [vmem:[%s2 + $0xc] sm:$0xf]
        %v1333 = vld [vmem:[%s2 + $0x10] sm:$0xf]
        %v1334 = vld [vmem:[%s2 + $0x14] sm:$0xf]
        %v1335 = vld [vmem:[%s2 + $0x18] sm:$0xf]
        %v1336 = vld [vmem:[%s2 + $0x1c] sm:$0xf]
        %v1345 = vunpack.c.l.b16 %v1329
        %v1346 = vunpack.c.l.b16 %v1330
        %v1347 = vunpack.c.l.b16 %v1331
        %v1348 = vunpack.c.l.b16 %v1332
        %v1349 = vunpack.c.l.b16 %v1333
        %v1350 = vunpack.c.l.b16 %v1334
        %v1351 = vunpack.c.l.b16 %v1335
        %v1352 = vunpack.c.l.b16 %v1336
        %v1353 = vpack.c.b16 %v1346, %v1345
        %v1354 = vpack.c.b16 %v1348, %v1347
        %v1355 = vpack.c.b16 %v1350, %v1349
        %v1356 = vpack.c.b16 %v1352, %v1351
        %vm1361 = vcmask 523264
        %v1363 = vsel %vm1361, %v1328, 0
        %1365 = vmatprep.subr.bf16.mxu0 0
        %1366 = vmatpush1.bf16.msra.mxu0 %v1353
        %1367 = vmatprep.subr.bf16.mxu0 0
        %1368 = vmatpush1.bf16.msra.mxu0 %v1354
        %1369 = vmatprep.subr.bf16.mxu0 0
        %1370 = vmatpush1.bf16.msra.mxu0 %v1355
        %1371 = vmatprep.subr.bf16.mxu0 0
        %1372 = vmatpush1.bf16.msra.mxu0 %v1356
        %1373 = vmatprep.subr.bf16.mxu0 0
        %1374 = vmatpush1.bf16.msra.mxu0 0
        %1375 = vmatprep.subr.bf16.mxu0 0
        %1376 = vmatpush1.bf16.msra.mxu0 0
        %1377 = vmatprep.subr.bf16.mxu0 0
        %1378 = vmatpush1.bf16.msra.mxu0 0
        %1379 = vmatprep.subr.bf16.mxu0 0
        %1380 = vmatpush1.bf16.msra.mxu0 0
        %1381 = vmatprep.subr.bf16.mxu0 0
        %1382 = vmatpush1.bf16.msra.mxu0 0
        %1383 = vmatprep.subr.bf16.mxu0 0
        %1384 = vmatpush1.bf16.msra.mxu0 0
        %1385 = vmatprep.subr.bf16.mxu0 0
        %1386 = vmatpush1.bf16.msra.mxu0 0
        %1387 = vmatprep.subr.bf16.mxu0 0
        %1388 = vmatpush1.bf16.msra.mxu0 0
        %1389 = vmatprep.subr.bf16.mxu0 0
        %1390 = vmatpush1.bf16.msra.mxu0 0
        %1391 = vmatprep.subr.bf16.mxu0 0
        %1392 = vmatpush1.bf16.msra.mxu0 0
        %1393 = vmatprep.subr.bf16.mxu0 0
        %1394 = vmatpush1.bf16.msra.mxu0 0
        %1395 = vmatprep.subr.bf16.mxu0 0
        %1396 = vmatpush1.bf16.msra.mxu0 0
        %1397 = vmatprep.mubr.bf16.mxu0 0
        %1398 = vmatmul.mubr.bf16.gmra.mrb[0].mxu0 %v1363
        %v1399 = vpop.f32.mrb[0].mxu0
        %v1400 = vadd.f32 0.0, %v1399
        %v1401 = vpop.f32.mrb[0].mxu0
        %v1402 = vpop.f32.mrb[0].mxu0
        %v1403 = vpop.f32.mrb[0].mxu0
        %1404 = vdwg.mxu0
        %1405 = vst.msk [vmem:[%s161] sm:$0xff] %vm193, %v1400
        %s1406 = sand.u32 %s93, 1
        %s1407 = scalar_lea.sflag [#allocation3], %s1406
        %s1408 = sand.u32 %s93, 1
        %s1409 = smul.addr %s1408, 8
        %s1410 = scalar_lea.vmem [#allocation2], %s1409
        // Predicated region
        $region33: #{tpu_custom_call.1} parent=31 // pred_check
          %p1411 = pneg %p103
        $region34: #{tpu_custom_call.1} parent=31 // pred_check_branch
          %1413 = sbr.rel (%p1411) target = $region36
        $region35: #{tpu_custom_call.1} parent=31 // pred_region
          %s1415 = ssub.s32 128, 128
          %1416 = vsyncadd %s1407, %s1415
          %s1417 = smul.addr %s17, 128
          %s1418 = scalar_lea.hbm %s3, %s1417
          %s1420 = sshll.u32 %s1410, 4
          %s1421 = int_to_ptr.vmem [resolvable:$true] %s1420
          %1423 = dma.vmem_to_hbm [thread:$0]  %s1421, 128, %s1418, %s1407
        $region36: #{tpu_custom_call.1} parent=31 // pred_fallthru
          _
      $region32: #{tpu_custom_call.1} parent=5 // pred_fallthru
        _
      %p1424 = scmp.le.s32.totalorder 2, %s12
      // Predicated region
      $region37: #{tpu_custom_call.1} parent=5 // pred_check
        %p1425 = pneg %p1424
      $region38: #{tpu_custom_call.1} parent=5 // pred_check_branch
        %1427 = sbr.rel (%p1425) target = $region40
      $region39: #{tpu_custom_call.1} parent=5 // pred_region
        %s1428 = ssub.s32 %s12, 2
        // Predicated region
        $region41: #{tpu_custom_call.1} parent=39 // pred_check
          %p1429 = pneg %p109
        $region42: #{tpu_custom_call.1} parent=39 // pred_check_branch
          %1431 = sbr.rel (%p1429) target = $region44
        $region43: #{tpu_custom_call.1} parent=39 // pred_region
          %s1432 = sand.u32 %s94, 1
          %s1433 = scalar_lea.sflag [#allocation3], %s1432
          %s1434 = sand.u32 %s94, 1
          %s1435 = smul.addr %s1434, 8
          %s1436 = scalar_lea.vmem [#allocation2], %s1435
          %1437 = dma.done %s1433, 128
        $region44: #{tpu_custom_call.1} parent=39 // pred_fallthru
          _
      $region40: #{tpu_custom_call.1} parent=5 // pred_fallthru
        _
    $region6: #{tpu_custom_call.1} parent=1 // loop_footer
      %s16 = sadd.s32 1, %s12
    $region7: #{tpu_custom_call.1} parent=1 // loop_footer_branch
      %11 = sbr.rel target = $region3
    $region8: #{tpu_custom_call.1} parent=1 // loop_exit
      _
    %1438 = vsyncpa [#allocation3], 1
    %s1439 = scalar_lea.sflag [#allocation3], 1
    %1440 = vsyncpa %s1439, 1

</llo_original>
